<compile_context>
chip_gen: v5e
topology: v5e:2x2
jax: 0.10.0
libtpu: 0.0.40
codegen_flags: <defaults>
</compile_context>

<pallas_src>
import functools

import jax
import jax.numpy as jnp
from jax import lax
from jax.experimental import pallas as pl
from jax.experimental.pallas import tpu as pltpu


def _ca_kernel(x_ref, p_ref, o_ref, *, C, Csq, TB):
    """Fused channel attention for one block of TB batch items.

    x_ref: (TB, C, HW)   input tile, HW on the lane axis (f32 or bf16)
    p_ref: (Cp, 2*Csq+1) f32 packed params:
             [:C, 0:Csq]      = conv1.weight^T (C, Csq)
             [:C, Csq:2*Csq]  = conv2.weight   (C, Csq)
             [:C, 2*Csq]      = conv2.bias     (C,)
             [C,  0:Csq]      = conv1.bias     (Csq,)
    o_ref: (TB, C, HW)   output tile (same dtype as x_ref)
    """
    inv_hw = jnp.float32(1.0 / x_ref.shape[-1])

    def body(b, carry):
        # One batch item at a time: keeps only ~one (C, HW) slab live in vregs.
        x = x_ref[b].astype(jnp.float32)                          # (C, HW)

        # AdaptiveAvgPool2d(1): mean over the spatial (lane) axis, in f32.
        pooled = jnp.sum(x, axis=-1, keepdims=True) * inv_hw      # (C, 1)

        # 1x1 conv C -> Csq (squeeze): h[o] = sum_c W1[o,c]*pooled[c] + b1[o].
        # VPU broadcast-mul + sublane reduce; no degenerate 1-wide MXU matmul.
        w1t = p_ref[0:C, 0:Csq]                                   # (C, Csq)
        b1 = p_ref[C:C + 1, 0:Csq]                                # (1, Csq)
        h = jnp.sum(w1t * pooled, axis=0, keepdims=True) + b1     # (1, Csq)
        h = jnp.maximum(h, 0.0)                                   # ReLU

        # 1x1 conv Csq -> C (excite): y[c] = sum_o W2[c,o]*h[o] + b2[c].
        w2 = p_ref[0:C, Csq:2 * Csq]                              # (C, Csq)
        b2 = p_ref[0:C, 2 * Csq:2 * Csq + 1]                      # (C, 1)
        y = jnp.sum(w2 * h, axis=1, keepdims=True) + b2           # (C, 1)
        y = jax.nn.sigmoid(y)                                     # EUP path

        # Channel-wise rescale, broadcast over the lane (spatial) axis.
        o_ref[b] = (x * y).astype(o_ref.dtype)
        return carry

    lax.fori_loop(0, TB, body, 0)


def _pick_tb(B, per_batch_bytes, target_bytes=1 << 20):
    """Largest divisor of B with tile <= ~target, keeping grid length >= 2."""
    cap = max(1, target_bytes // max(per_batch_bytes, 1))
    if B >= 2:
        cap = max(1, min(cap, B // 2))   # grid >= 2 -> both v7x TCs get work
    tb = 1
    for d in range(1, min(B, cap) + 1):
        if B % d == 0:
            tb = d
    return tb


def channel_attention(x, w1, b1, w2, b2):
    """x: (B, C, H, W); w1: (Csq, C); b1: (Csq,); w2: (C, Csq); b2: (C,).

    I/O dtype of x is preserved (f32 or bf16); math is done in f32 in-kernel.
    Lane-dense (unmasked) stores require H*W % 128 == 0; other sizes are
    still correct but use masked partial stores.
    """
    B, C, H, W = x.shape
    Csq = w1.shape[0]
    HW = H * W

    x3 = x.reshape(B, C, HW)                        # free reshape, no transpose
    TB = _pick_tb(B, C * HW * x.dtype.itemsize)
    grid = B // TB                                  # TB divides B by construction

    # Pack all params into one small f32 slab -> a single grid-invariant DMA.
    Cp = ((C + 1 + 7) // 8) * 8                     # pad rows to a sublane multiple
    P = 2 * Csq + 1
    params = jnp.zeros((Cp, P), jnp.float32)
    params = params.at[:C, 0:Csq].set(w1.astype(jnp.float32).T)
    params = params.at[:C, Csq:2 * Csq].set(w2.astype(jnp.float32))
    params = params.at[:C, 2 * Csq].set(b2.astype(jnp.float32))
    params = params.at[C, 0:Csq].set(b1.astype(jnp.float32))

    kernel = functools.partial(_ca_kernel, C=C, Csq=Csq, TB=TB)

    out = pl.pallas_call(
        kernel,
        out_shape=jax.ShapeDtypeStruct((B, C, HW), x.dtype),
        grid=(grid,),
        in_specs=[
            pl.BlockSpec((TB, C, HW), lambda g: (g, 0, 0)),   # TB batch items / step
            pl.BlockSpec((Cp, P), lambda g: (0, 0)),          # params: grid-invariant
        ],
        out_specs=pl.BlockSpec((TB, C, HW), lambda g: (g, 0, 0)),
        compiler_params=pltpu.CompilerParams(
            dimension_semantics=("parallel",),                # batch axis independent
            vmem_limit_bytes=32 * 1024 * 1024,                # safe on v5e/v6e/v7x
        ),
    )(x3, params)

    return out.reshape(B, C, H, W)


def _reference(x, w1, b1, w2, b2):
    xf = x.astype(jnp.float32)
    pooled = jnp.mean(xf, axis=(2, 3))                        # (B, C)
    h = jnp.maximum(pooled @ w1.T + b1, 0.0)                  # (B, Csq)
    s = jax.nn.sigmoid(h @ w2.T + b2)                         # (B, C)
    return xf * s[:, :, None, None]


if __name__ == "__main__":
    # num_feat = 64, squeeze_factor = 16 (module default), small spatial.
    C, H, W = 64, 16, 16
    squeeze_factor = 16
    Csq = C // squeeze_factor

    key = jax.random.PRNGKey(0)
    k1, k2, k3, k4, kx = jax.random.split(key, 5)
    # conv1.weight (Csq, C, 1, 1) -> (Csq, C); conv2.weight (C, Csq, 1, 1) -> (C, Csq)
    w1 = jax.random.normal(k1, (Csq, C), jnp.float32) * 0.1
    b1 = jax.random.normal(k2, (Csq,), jnp.float32) * 0.1
    w2 = jax.random.normal(k3, (C, Csq), jnp.float32) * 0.1
    b2 = jax.random.normal(k4, (C,), jnp.float32) * 0.1

    fn = jax.jit(channel_attention)

    # 1) Baseline shapes (B=2 -> TB=1, grid=2), f32.
    x = jax.random.normal(kx, (2, C, H, W), jnp.float32)
    out = jax.block_until_ready(fn(x, w1, b1, w2, b2))
    ref = _reference(x, w1, b1, w2, b2)
    assert out.shape == x.shape
    assert bool(jnp.all(jnp.isfinite(out)))
    assert float(jnp.max(jnp.abs(out - ref))) < 1e-5

    # 2) Larger batch exercises TB > 1 (B=8 -> TB=4, grid=2), f32.
    x8 = jax.random.normal(jax.random.fold_in(kx, 1), (8, C, H, W), jnp.float32)
    out8 = jax.block_until_ready(fn(x8, w1, b1, w2, b2))
    ref8 = _reference(x8, w1, b1, w2, b2)
    assert float(jnp.max(jnp.abs(out8 - ref8))) < 1e-5

    # 3) bf16 I/O path (halves HBM traffic); math stays f32 in-kernel.
    xb = jax.random.normal(jax.random.fold_in(kx, 2), (4, C, H, W), jnp.float32)
    xb16 = xb.astype(jnp.bfloat16)
    outb = jax.block_until_ready(fn(xb16, w1, b1, w2, b2))
    assert outb.dtype == jnp.bfloat16
    refb = _reference(xb16, w1, b1, w2, b2)
    assert float(jnp.max(jnp.abs(outb.astype(jnp.float32) - refb))) < 3e-2

    print("KERNEL_OK")
</pallas_src>

<mosaic_0001>
module attributes {stable_mosaic.version = 11 : i64} {
  func.func @_ca_kernel(%arg0: i32, %arg1: memref<1x64x256xf32, #tpu.memory_space<vmem>>, %arg2: memref<72x9xf32, #tpu.memory_space<vmem>>, %arg3: memref<1x64x256xf32, #tpu.memory_space<vmem>>) attributes {dimension_semantics = [#tpu.dimension_semantics<parallel>], iteration_bounds = array<i64: 2>, scalar_prefetch = 0 : i64, scratch_operands = 0 : i64, tpu.core_type = #tpu.core_type<tc>, window_params = [{transform_indices = @transform_0, window_bounds = array<i64: 1, 64, 256>}, {pipeline_mode = #tpu.pipeline_mode<synchronous>, transform_indices = @transform_1, window_bounds = array<i64: 72, 9>}, {transform_indices = @transform_2, window_bounds = array<i64: 1, 64, 256>}]} {
    %cst = arith.constant 3.906250e-03 : f32
    %c0_i32 = arith.constant 0 : i32
    %0 = arith.index_cast %c0_i32 : i32 to index
    %c0 = arith.constant 0 : index
    %c0_0 = arith.constant 0 : index
    %1 = vector.load %arg1[%0, %c0, %c0_0] : memref<1x64x256xf32, #tpu.memory_space<vmem>>, vector<1x64x256xf32>
    %2 = vector.shape_cast %1 : vector<1x64x256xf32> to vector<64x256xf32>
    %cst_1 = arith.constant dense<0.000000e+00> : vector<64xf32>
    %3 = vector.multi_reduction <add>, %2, %cst_1 [1] : vector<64x256xf32> to vector<64xf32>
    %4 = vector.shape_cast %3 : vector<64xf32> to vector<64x1xf32>
    %5 = vector.broadcast %cst : f32 to vector<64x1xf32>
    %6 = arith.mulf %4, %5 : vector<64x1xf32>
    %c0_2 = arith.constant 0 : index
    %c0_3 = arith.constant 0 : index
    %7 = vector.load %arg2[%c0_2, %c0_3] : memref<72x9xf32, #tpu.memory_space<vmem>>, vector<64x4xf32>
    %c64 = arith.constant 64 : index
    %c0_4 = arith.constant 0 : index
    %8 = vector.load %arg2[%c64, %c0_4] : memref<72x9xf32, #tpu.memory_space<vmem>>, vector<1x4xf32>
    %9 = vector.broadcast %6 : vector<64x1xf32> to vector<64x4xf32>
    %10 = arith.mulf %7, %9 : vector<64x4xf32>
    %cst_5 = arith.constant dense<0.000000e+00> : vector<4xf32>
    %11 = vector.multi_reduction <add>, %10, %cst_5 [0] : vector<64x4xf32> to vector<4xf32>
    %12 = vector.shape_cast %11 : vector<4xf32> to vector<1x4xf32>
    %13 = arith.addf %12, %8 : vector<1x4xf32>
    %cst_6 = arith.constant 0.000000e+00 : f32
    %14 = vector.broadcast %cst_6 : f32 to vector<1x4xf32>
    %15 = arith.maximumf %13, %14 : vector<1x4xf32>
    %c0_7 = arith.constant 0 : index
    %c4 = arith.constant 4 : index
    %16 = vector.load %arg2[%c0_7, %c4] : memref<72x9xf32, #tpu.memory_space<vmem>>, vector<64x4xf32>
    %c0_8 = arith.constant 0 : index
    %c8 = arith.constant 8 : index
    %17 = vector.load %arg2[%c0_8, %c8] : memref<72x9xf32, #tpu.memory_space<vmem>>, vector<64x1xf32>
    %18 = vector.broadcast %15 : vector<1x4xf32> to vector<64x4xf32>
    %19 = arith.mulf %16, %18 : vector<64x4xf32>
    %cst_9 = arith.constant dense<0.000000e+00> : vector<64xf32>
    %20 = vector.multi_reduction <add>, %19, %cst_9 [1] : vector<64x4xf32> to vector<64xf32>
    %21 = vector.shape_cast %20 : vector<64xf32> to vector<64x1xf32>
    %22 = arith.addf %21, %17 : vector<64x1xf32>
    %23 = arith.negf %22 : vector<64x1xf32>
    %24 = math.exp %23 : vector<64x1xf32>
    %cst_10 = arith.constant 1.000000e+00 : f32
    %25 = vector.broadcast %cst_10 : f32 to vector<64x1xf32>
    %26 = arith.addf %25, %24 : vector<64x1xf32>
    %27 = arith.divf %25, %26 : vector<64x1xf32>
    %28 = vector.broadcast %27 : vector<64x1xf32> to vector<64x256xf32>
    %29 = arith.mulf %2, %28 : vector<64x256xf32>
    %30 = arith.index_cast %c0_i32 : i32 to index
    %c0_11 = arith.constant 0 : index
    %c0_12 = arith.constant 0 : index
    %31 = vector.load %arg3[%30, %c0_11, %c0_12] : memref<1x64x256xf32, #tpu.memory_space<vmem>>, vector<1x64x256xf32>
    %32 = vector.shape_cast %31 : vector<1x64x256xf32> to vector<64x256xf32>
    %33 = vector.shape_cast %29 : vector<64x256xf32> to vector<1x64x256xf32>
    tpu.vector_store %arg3[%30, %c0_11, %c0_12], %33 {strides = array<i32>} : memref<1x64x256xf32, #tpu.memory_space<vmem>>, vector<1x64x256xf32>,
    %c1_i32 = arith.constant 1 : i32
    return
  }
  func.func @transform_0(%arg0: i32) -> (i32, i32, i32) {
    %c0_i32 = arith.constant 0 : i32
    %c0_i32_0 = arith.constant 0 : i32
    %c0_i32_1 = arith.constant 0 : i32
    return %arg0, %c0_i32, %c0_i32_0 : i32, i32, i32
  }
  func.func @transform_1(%arg0: i32) -> (i32, i32) {
    %c0_i32 = arith.constant 0 : i32
    %c0_i32_0 = arith.constant 0 : i32
    %c0_i32_1 = arith.constant 0 : i32
    return %c0_i32, %c0_i32_0 : i32, i32
  }
  func.func @transform_2(%arg0: i32) -> (i32, i32, i32) {
    %c0_i32 = arith.constant 0 : i32
    %c0_i32_0 = arith.constant 0 : i32
    %c0_i32_1 = arith.constant 0 : i32
    return %arg0, %c0_i32, %c0_i32_0 : i32, i32, i32
  }
}

</mosaic_0001>

<llo_original>
// kernel: channel_attention.1
$region0: #{channel_attention.1}
  #allocation0 [shape = 'u32[]', space=smem, size = 0x4, offset = 0x4, fixed_abs, tag = 'smem constant byte address 0x4 - core index']
  #allocation1 [shape = 'u32[72,128]{1,0:T(1,128)}', space=vmem, size = 0x9000, scoped, tag = 'internal scratch']
  %s0 = inlined_call_operand.vmem [shape: f32[2,64,256], index: 0, kind: input, shape index: {}]
  %s1 = inlined_call_operand.vmem [shape: f32[72,9], index: 1, kind: input, shape index: {}]
  %s2 = inlined_call_operand.vmem [shape: f32[2,64,256], index: 2, kind: output, shape index: {}]
  %s3 = sld [smem:[#allocation0]]
  $region41: #{channel_attention.1} parent=0
    _
  %s5 = ssub.s32 1, %s3
  %s6 = scalar_select 0, %s5, %s3
  loop: start=0, step=1, limit=4
  $region2: #{channel_attention.1} parent=0 // loop_pre_header
    _
  $region3: #{channel_attention.1} parent=0 // loop_header
    %s8 = sphi 0, %s12
    %p9 = scmp.ge.s32.totalorder %s8, 4
    %s18 = sphi 0, %s20
    %s21 = sphi 0, %s18
    %s22 = sphi 0, %s21
    %s38 = sphi 0, %s22
    %s42 = sphi 0, %s42
    %s44 = sphi 0, %s42
    %s45 = sphi 0, %s44
    %s59 = sphi 0, %s45
    %s65 = sphi 0, %s67
    %s68 = sphi 0, %s65
    %s69 = sphi 0, %s68
    %s85 = sphi 0, %s69
  $region4: #{channel_attention.1} parent=0 // loop_header_branch
    %11 = sbr.rel (%p9) target = $region8
  $region5: #{channel_attention.1} parent=0 // loop_body
    %s13 = ssub.s32 %s8, 1
    %s14 = ssub.s32 %s8, 2
    %s15 = sadd.s32 %s8, 1
    %s16 = ssub.s32 %s8, %s15
    %p17 = scmp.eq.s32.totalorder %s16, 0
    %s19 = sadd.s32 %s18, 1
    %s20 = scalar_select %p17, %s18, %s19
    %p23 = pneg %p17
    %p24 = scmp.eq.s32.totalorder %s8, 1
    %p25 = por %p23, %p24
    %p26 = scmp.ne.s32.totalorder %s18, %s21
    %p27 = scmp.eq.s32.totalorder %s8, 0
    %p28 = por %p26, %p27
    %p29 = scmp.ne.s32.totalorder %s18, %s21
    %p30 = scmp.eq.s32.totalorder %s13, 1
    %p31 = por %p29, %p30
    %p32 = scmp.ne.s32.totalorder %s21, %s22
    %p33 = scmp.eq.s32.totalorder %s13, 0
    %p34 = por %p32, %p33
    %p35 = scmp.ne.s32.totalorder %s21, %s22
    %p36 = scmp.eq.s32.totalorder %s14, 1
    %p37 = por %p35, %p36
    %p39 = scmp.ne.s32.totalorder %s22, %s38
    %p40 = scmp.eq.s32.totalorder %s14, 0
    %p41 = por %p39, %p40
    %s43 = sadd.s32 %s42, 1
    %p46 = scmp.eq.s32.totalorder %s8, 1
    %p47 = scmp.ne.s32.totalorder %s42, %s44
    %p48 = scmp.eq.s32.totalorder %s8, 0
    %p49 = por %p47, %p48
    %p50 = scmp.ne.s32.totalorder %s42, %s44
    %p51 = scmp.eq.s32.totalorder %s13, 1
    %p52 = por %p50, %p51
    %p53 = scmp.ne.s32.totalorder %s44, %s45
    %p54 = scmp.eq.s32.totalorder %s13, 0
    %p55 = por %p53, %p54
    %p56 = scmp.ne.s32.totalorder %s44, %s45
    %p57 = scmp.eq.s32.totalorder %s14, 1
    %p58 = por %p56, %p57
    %p60 = scmp.ne.s32.totalorder %s45, %s59
    %p61 = scmp.eq.s32.totalorder %s14, 0
    %p62 = por %p60, %p61
    %s63 = ssub.s32 %s8, %s15
    %p64 = scmp.eq.s32.totalorder %s63, 0
    %s66 = sadd.s32 %s65, 1
    %s67 = scalar_select %p64, %s65, %s66
    %p70 = pneg %p64
    %p71 = scmp.eq.s32.totalorder %s8, 1
    %p72 = por %p70, %p71
    %p73 = scmp.ne.s32.totalorder %s65, %s68
    %p74 = scmp.eq.s32.totalorder %s8, 0
    %p75 = por %p73, %p74
    %p76 = scmp.ne.s32.totalorder %s65, %s68
    %p77 = scmp.eq.s32.totalorder %s13, 1
    %p78 = por %p76, %p77
    %p79 = scmp.ne.s32.totalorder %s68, %s69
    %p80 = scmp.eq.s32.totalorder %s13, 0
    %p81 = por %p79, %p80
    %p82 = scmp.ne.s32.totalorder %s68, %s69
    %p83 = scmp.eq.s32.totalorder %s14, 1
    %p84 = por %p82, %p83
    %p86 = scmp.ne.s32.totalorder %s69, %s85
    %p87 = scmp.eq.s32.totalorder %s14, 0
    %p88 = por %p86, %p87
    %p89 = scmp.le.s32.totalorder 1, %s8
    %p90 = scmp.lt.s32.totalorder %s8, 3
    %p91 = pnand %p89, %p90
    %p92 = pneg %p91
    // Predicated region
    $region9: #{channel_attention.1} parent=5 // pred_check
      _
    $region10: #{channel_attention.1} parent=5 // pred_check_branch
      %94 = sbr.rel (%p91) target = $region12
    $region11: #{channel_attention.1} parent=5 // pred_region
      %s95 = ssub.s32 %s8, 1
      // Predicated region
      $region13: #{channel_attention.1} parent=11 // pred_check
        %p96 = pneg %p55
      $region14: #{channel_attention.1} parent=11 // pred_check_branch
        %98 = sbr.rel (%p96) target = $region16
      $region15: #{channel_attention.1} parent=11 // pred_region
        _
      $region16: #{channel_attention.1} parent=11 // pred_fallthru
        _
    $region12: #{channel_attention.1} parent=5 // pred_fallthru
      _
    %p99 = scmp.lt.s32.totalorder %s8, 2
    // Predicated region
    $region17: #{channel_attention.1} parent=5 // pred_check
      %p100 = pneg %p99
    $region18: #{channel_attention.1} parent=5 // pred_check_branch
      %102 = sbr.rel (%p100) target = $region20
    $region19: #{channel_attention.1} parent=5 // pred_region
      // Predicated region
      $region21: #{channel_attention.1} parent=19 // pred_check
        %p103 = pneg %p28
      $region22: #{channel_attention.1} parent=19 // pred_check_branch
        %105 = sbr.rel (%p103) target = $region24
      $region23: #{channel_attention.1} parent=19 // pred_region
        %p106 = scmp.lt.s32.totalorder %s8, 1
        %s107 = scalar_select %p106, %s8, 1
        %s108 = smul.addr %s107, 16
        %s109 = smul.addr %s108, 8
        %s110 = scalar_lea.vmem %s0, %s109
      $region24: #{channel_attention.1} parent=19 // pred_fallthru
        _
    $region20: #{channel_attention.1} parent=5 // pred_fallthru
      _
    %p111 = scmp.le.s32.totalorder 1, %s8
    %p112 = scmp.lt.s32.totalorder %s8, 3
    %p113 = pnand %p111, %p112
    %p114 = pneg %p113
    // Predicated region
    $region25: #{channel_attention.1} parent=5 // pred_check
      _
    $region26: #{channel_attention.1} parent=5 // pred_check_branch
      %116 = sbr.rel (%p113) target = $region28
    $region27: #{channel_attention.1} parent=5 // pred_region
      %s117 = ssub.s32 %s8, 1
      %p118 = scmp.lt.s32.totalorder %s13, 1
      %s119 = scalar_select %p118, %s13, 1
      %s120 = smul.addr %s119, 16
      %s121 = smul.addr %s120, 8
      %s122 = scalar_lea.vmem %s0, %s121
      %p123 = pneg %p34
      %p124 = pneg %p31
      %p125 = pneg %p55
      %p126 = pneg %p52
      %p127 = pneg %p81
      %p128 = pneg %p78
      %p129 = scmp.lt.s32.totalorder %s13, 1
      %s130 = scalar_select %p129, %s13, 1
      %s131 = smul.addr %s130, 16
      %s132 = smul.addr %s131, 8
      %s133 = scalar_lea.vmem %s2, %s132
      %p134 = scmp.lt.s32.totalorder %s13, 1
      %s135 = scalar_select %p134, %s13, 1
      %s136 = smul.addr %s135, 16
      %s137 = smul.addr %s136, 8
      %s138 = scalar_lea.vmem %s0, %s137
      %p139 = scmp.lt.s32.totalorder %s13, 1
      %s140 = scalar_select %p139, %s13, 1
      %s141 = smul.addr %s140, 16
      %s142 = smul.addr %s141, 8
      %s143 = scalar_lea.vmem %s2, %s142
      %v144 = vld [vmem:[%s138] sm:$0xff]
      %v145 = vld [vmem:[%s138 + $0x8] sm:$0xff]
      %v146 = vld [vmem:[%s138 + $0x10] sm:$0xff]
      %v147 = vld [vmem:[%s138 + $0x18] sm:$0xff]
      %v148 = vld [vmem:[%s138 + $0x20] sm:$0xff]
      %v149 = vld [vmem:[%s138 + $0x28] sm:$0xff]
      %v150 = vld [vmem:[%s138 + $0x30] sm:$0xff]
      %v151 = vld [vmem:[%s138 + $0x38] sm:$0xff]
      %v152 = vld [vmem:[%s138 + $0x40] sm:$0xff]
      %v153 = vld [vmem:[%s138 + $0x48] sm:$0xff]
      %v154 = vld [vmem:[%s138 + $0x50] sm:$0xff]
      %v155 = vld [vmem:[%s138 + $0x58] sm:$0xff]
      %v156 = vld [vmem:[%s138 + $0x60] sm:$0xff]
      %v157 = vld [vmem:[%s138 + $0x68] sm:$0xff]
      %v158 = vld [vmem:[%s138 + $0x70] sm:$0xff]
      %v159 = vld [vmem:[%s138 + $0x78] sm:$0xff]
      %v160 = vadd.f32 %v144, %v145
      %161 = vadd.xlane.f32.xlu0 %v160
      %v162 = vpop.xlane.xlu0 %161
      %v163 = vadd.f32 %v146, %v147
      %164 = vadd.xlane.f32.xlu0 %v163
      %v165 = vpop.xlane.xlu0 %164
      %v166 = vadd.f32 %v148, %v149
      %167 = vadd.xlane.f32.xlu0 %v166
      %v168 = vpop.xlane.xlu0 %167
      %v169 = vadd.f32 %v150, %v151
      %170 = vadd.xlane.f32.xlu0 %v169
      %v171 = vpop.xlane.xlu0 %170
      %v172 = vadd.f32 %v152, %v153
      %173 = vadd.xlane.f32.xlu0 %v172
      %v174 = vpop.xlane.xlu0 %173
      %v175 = vadd.f32 %v154, %v155
      %176 = vadd.xlane.f32.xlu0 %v175
      %v177 = vpop.xlane.xlu0 %176
      %v178 = vadd.f32 %v156, %v157
      %179 = vadd.xlane.f32.xlu0 %v178
      %v180 = vpop.xlane.xlu0 %179
      %v181 = vadd.f32 %v158, %v159
      %182 = vadd.xlane.f32.xlu0 %v181
      %v183 = vpop.xlane.xlu0 %182
      %v184 = vmul.f32 %v162, 0.00390625
      %v185 = vmul.f32 %v165, 0.00390625
      %v186 = vmul.f32 %v168, 0.00390625
      %v187 = vmul.f32 %v171, 0.00390625
      %v188 = vmul.f32 %v174, 0.00390625
      %v189 = vmul.f32 %v177, 0.00390625
      %v190 = vmul.f32 %v180, 0.00390625
      %v191 = vmul.f32 %v183, 0.00390625
      %v192 = vld [vmem:[%s1] sm:$0xff]
      %v193 = vld [vmem:[%s1 + $0x8] sm:$0xff]
      %v194 = vld [vmem:[%s1 + $0x10] sm:$0xff]
      %v195 = vld [vmem:[%s1 + $0x18] sm:$0xff]
      %v196 = vld [vmem:[%s1 + $0x20] sm:$0xff]
      %v197 = vld [vmem:[%s1 + $0x28] sm:$0xff]
      %v198 = vld [vmem:[%s1 + $0x30] sm:$0xff]
      %v199 = vld [vmem:[%s1 + $0x38] sm:$0xff]
      %v200 = vld [vmem:[%s1 + $0x40] sm:$0x1]
      %v201 = vmul.f32 %v192, %v184
      %v202 = vmul.f32 %v193, %v185
      %v203 = vmul.f32 %v194, %v186
      %v204 = vmul.f32 %v195, %v187
      %v205 = vmul.f32 %v196, %v188
      %v206 = vmul.f32 %v197, %v189
      %v207 = vmul.f32 %v198, %v190
      %v208 = vmul.f32 %v199, %v191
      %vm209 = vcmask 31744
      %v210 = vsel %vm209, %v201, 0.0
      %v211 = vsel %vm209, %v202, 0.0
      %v212 = vadd.f32 %v210, %v211
      %v213 = vsel %vm209, %v203, 0.0
      %v214 = vadd.f32 %v212, %v213
      %v215 = vsel %vm209, %v204, 0.0
      %v216 = vadd.f32 %v214, %v215
      %v217 = vsel %vm209, %v205, 0.0
      %v218 = vadd.f32 %v216, %v217
      %v219 = vsel %vm209, %v206, 0.0
      %v220 = vadd.f32 %v218, %v219
      %v221 = vsel %vm209, %v207, 0.0
      %v222 = vadd.f32 %v220, %v221
      %v223 = vsel %vm209, %v208, 0.0
      %v224 = vadd.f32 %v222, %v223
      %v225 = vrot.slane %v224, 4
      %v226 = vadd.f32 %v224, %v225
      %v227 = vrot.slane %v226, 2
      %v228 = vadd.f32 %v226, %v227
      %v229 = vrot.slane %v228, 1
      %v230 = vadd.f32 %v228, %v229
      %v231 = vadd.f32 %v230, %v200
      %v232 = vmax.f32 %v231, 0.0
      %v233 = vperm.slane %v232, 0
      %235 = vrot.lane.b32.xlu0 %v233, 4
      %v236 = vpop.permute.xlu0 %235
      %v238 = vmul.f32 %v192, %v236
      %v239 = vmul.f32 %v193, %v236
      %v240 = vmul.f32 %v194, %v236
      %v241 = vmul.f32 %v195, %v236
      %v242 = vmul.f32 %v196, %v236
      %v243 = vmul.f32 %v197, %v236
      %v244 = vmul.f32 %v198, %v236
      %v245 = vmul.f32 %v199, %v236
      %254 = vrot.lane.b32.xlu0 %v238, 124
      %v255 = vpop.permute.xlu0 %254
      %256 = vrot.lane.b32.xlu0 %v239, 124
      %v257 = vpop.permute.xlu0 %256
      %258 = vrot.lane.b32.xlu0 %v240, 124
      %v259 = vpop.permute.xlu0 %258
      %260 = vrot.lane.b32.xlu0 %v241, 124
      %v261 = vpop.permute.xlu0 %260
      %262 = vrot.lane.b32.xlu0 %v242, 124
      %v263 = vpop.permute.xlu0 %262
      %264 = vrot.lane.b32.xlu0 %v243, 124
      %v265 = vpop.permute.xlu0 %264
      %266 = vrot.lane.b32.xlu0 %v244, 124
      %v267 = vpop.permute.xlu0 %266
      %268 = vrot.lane.b32.xlu0 %v245, 124
      %v269 = vpop.permute.xlu0 %268
      %v278 = vsel %vm209, %v255, 0.0
      %279 = vadd.xlane.f32.xlu0 %v278
      %v280 = vpop.xlane.xlu0 %279
      %v281 = vsel %vm209, %v257, 0.0
      %282 = vadd.xlane.f32.xlu0 %v281
      %v283 = vpop.xlane.xlu0 %282
      %v284 = vsel %vm209, %v259, 0.0
      %285 = vadd.xlane.f32.xlu0 %v284
      %v286 = vpop.xlane.xlu0 %285
      %v287 = vsel %vm209, %v261, 0.0
      %288 = vadd.xlane.f32.xlu0 %v287
      %v289 = vpop.xlane.xlu0 %288
      %v290 = vsel %vm209, %v263, 0.0
      %291 = vadd.xlane.f32.xlu0 %v290
      %v292 = vpop.xlane.xlu0 %291
      %v293 = vsel %vm209, %v265, 0.0
      %294 = vadd.xlane.f32.xlu0 %v293
      %v295 = vpop.xlane.xlu0 %294
      %v296 = vsel %vm209, %v267, 0.0
      %297 = vadd.xlane.f32.xlu0 %v296
      %v298 = vpop.xlane.xlu0 %297
      %v299 = vsel %vm209, %v269, 0.0
      %300 = vadd.xlane.f32.xlu0 %v299
      %v301 = vpop.xlane.xlu0 %300
      %v302 = vadd.f32 %v280, %v192
      %v303 = vadd.f32 %v283, %v193
      %v304 = vadd.f32 %v286, %v194
      %v305 = vadd.f32 %v289, %v195
      %v306 = vadd.f32 %v292, %v196
      %v307 = vadd.f32 %v295, %v197
      %v308 = vadd.f32 %v298, %v198
      %v309 = vadd.f32 %v301, %v199
      %v310 = vxor.u32 %v302, 2147483648
      %v311 = vxor.u32 %v303, 2147483648
      %v312 = vxor.u32 %v304, 2147483648
      %v313 = vxor.u32 %v305, 2147483648
      %v314 = vxor.u32 %v306, 2147483648
      %v315 = vxor.u32 %v307, 2147483648
      %v316 = vxor.u32 %v308, 2147483648
      %v317 = vxor.u32 %v309, 2147483648
      %v318 = vmul.f32 %v310, 1.442695
      %v319 = vpow.pop %v318
      %v320 = vmul.f32 %v311, 1.442695
      %v321 = vpow.pop %v320
      %v322 = vmul.f32 %v312, 1.442695
      %v323 = vpow.pop %v322
      %v324 = vmul.f32 %v313, 1.442695
      %v325 = vpow.pop %v324
      %v326 = vmul.f32 %v314, 1.442695
      %v327 = vpow.pop %v326
      %v328 = vmul.f32 %v315, 1.442695
      %v329 = vpow.pop %v328
      %v330 = vmul.f32 %v316, 1.442695
      %v331 = vpow.pop %v330
      %v332 = vmul.f32 %v317, 1.442695
      %v333 = vpow.pop %v332
      %v334 = vadd.f32 %v319, 1.0
      %v335 = vadd.f32 %v321, 1.0
      %v336 = vadd.f32 %v323, 1.0
      %v337 = vadd.f32 %v325, 1.0
      %v338 = vadd.f32 %v327, 1.0
      %v339 = vadd.f32 %v329, 1.0
      %v340 = vadd.f32 %v331, 1.0
      %v341 = vadd.f32 %v333, 1.0
      %v342 = vrcp.pop %v334
      %v343 = vmul.f32 %v334, %v342
      %v344 = vsub.f32 1.0, %v343
      %v345 = vmul.f32 %v342, %v344
      %v346 = vadd.f32 %v342, %v345
      %vm347 = vweird.f32 %v334
      %vm348 = vweird.f32 %v342
      %vm349 = vmor %vm347, %vm348
      %v350 = vsel %vm349, %v342, %v346
      %v351 = vand.u32 2147483647, %v334
      %vm352 = vcmp.eq.f32.partialorder %v351, 8.507059e+37
      %v353 = vand.u32 %v334, 2147483648
      %v354 = vor.u32 1.1754944e-38, %v353
      %v355 = vsel %vm352, %v354, %v350
      %v356 = vmul.f32 1.0, %v355
      %v357 = vrcp.pop %v335
      %v358 = vmul.f32 %v335, %v357
      %v359 = vsub.f32 1.0, %v358
      %v360 = vmul.f32 %v357, %v359
      %v361 = vadd.f32 %v357, %v360
      %vm362 = vweird.f32 %v335
      %vm363 = vweird.f32 %v357
      %vm364 = vmor %vm362, %vm363
      %v365 = vsel %vm364, %v357, %v361
      %v366 = vand.u32 2147483647, %v335
      %vm367 = vcmp.eq.f32.partialorder %v366, 8.507059e+37
      %v368 = vand.u32 %v335, 2147483648
      %v369 = vor.u32 1.1754944e-38, %v368
      %v370 = vsel %vm367, %v369, %v365
      %v371 = vmul.f32 1.0, %v370
      %v372 = vrcp.pop %v336
      %v373 = vmul.f32 %v336, %v372
      %v374 = vsub.f32 1.0, %v373
      %v375 = vmul.f32 %v372, %v374
      %v376 = vadd.f32 %v372, %v375
      %vm377 = vweird.f32 %v336
      %vm378 = vweird.f32 %v372
      %vm379 = vmor %vm377, %vm378
      %v380 = vsel %vm379, %v372, %v376
      %v381 = vand.u32 2147483647, %v336
      %vm382 = vcmp.eq.f32.partialorder %v381, 8.507059e+37
      %v383 = vand.u32 %v336, 2147483648
      %v384 = vor.u32 1.1754944e-38, %v383
      %v385 = vsel %vm382, %v384, %v380
      %v386 = vmul.f32 1.0, %v385
      %v387 = vrcp.pop %v337
      %v388 = vmul.f32 %v337, %v387
      %v389 = vsub.f32 1.0, %v388
      %v390 = vmul.f32 %v387, %v389
      %v391 = vadd.f32 %v387, %v390
      %vm392 = vweird.f32 %v337
      %vm393 = vweird.f32 %v387
      %vm394 = vmor %vm392, %vm393
      %v395 = vsel %vm394, %v387, %v391
      %v396 = vand.u32 2147483647, %v337
      %vm397 = vcmp.eq.f32.partialorder %v396, 8.507059e+37
      %v398 = vand.u32 %v337, 2147483648
      %v399 = vor.u32 1.1754944e-38, %v398
      %v400 = vsel %vm397, %v399, %v395
      %v401 = vmul.f32 1.0, %v400
      %v402 = vrcp.pop %v338
      %v403 = vmul.f32 %v338, %v402
      %v404 = vsub.f32 1.0, %v403
      %v405 = vmul.f32 %v402, %v404
      %v406 = vadd.f32 %v402, %v405
      %vm407 = vweird.f32 %v338
      %vm408 = vweird.f32 %v402
      %vm409 = vmor %vm407, %vm408
      %v410 = vsel %vm409, %v402, %v406
      %v411 = vand.u32 2147483647, %v338
      %vm412 = vcmp.eq.f32.partialorder %v411, 8.507059e+37
      %v413 = vand.u32 %v338, 2147483648
      %v414 = vor.u32 1.1754944e-38, %v413
      %v415 = vsel %vm412, %v414, %v410
      %v416 = vmul.f32 1.0, %v415
      %v417 = vrcp.pop %v339
      %v418 = vmul.f32 %v339, %v417
      %v419 = vsub.f32 1.0, %v418
      %v420 = vmul.f32 %v417, %v419
      %v421 = vadd.f32 %v417, %v420
      %vm422 = vweird.f32 %v339
      %vm423 = vweird.f32 %v417
      %vm424 = vmor %vm422, %vm423
      %v425 = vsel %vm424, %v417, %v421
      %v426 = vand.u32 2147483647, %v339
      %vm427 = vcmp.eq.f32.partialorder %v426, 8.507059e+37
      %v428 = vand.u32 %v339, 2147483648
      %v429 = vor.u32 1.1754944e-38, %v428
      %v430 = vsel %vm427, %v429, %v425
      %v431 = vmul.f32 1.0, %v430
      %v432 = vrcp.pop %v340
      %v433 = vmul.f32 %v340, %v432
      %v434 = vsub.f32 1.0, %v433
      %v435 = vmul.f32 %v432, %v434
      %v436 = vadd.f32 %v432, %v435
      %vm437 = vweird.f32 %v340
      %vm438 = vweird.f32 %v432
      %vm439 = vmor %vm437, %vm438
      %v440 = vsel %vm439, %v432, %v436
      %v441 = vand.u32 2147483647, %v340
      %vm442 = vcmp.eq.f32.partialorder %v441, 8.507059e+37
      %v443 = vand.u32 %v340, 2147483648
      %v444 = vor.u32 1.1754944e-38, %v443
      %v445 = vsel %vm442, %v444, %v440
      %v446 = vmul.f32 1.0, %v445
      %v447 = vrcp.pop %v341
      %v448 = vmul.f32 %v341, %v447
      %v449 = vsub.f32 1.0, %v448
      %v450 = vmul.f32 %v447, %v449
      %v451 = vadd.f32 %v447, %v450
      %vm452 = vweird.f32 %v341
      %vm453 = vweird.f32 %v447
      %vm454 = vmor %vm452, %vm453
      %v455 = vsel %vm454, %v447, %v451
      %v456 = vand.u32 2147483647, %v341
      %vm457 = vcmp.eq.f32.partialorder %v456, 8.507059e+37
      %v458 = vand.u32 %v341, 2147483648
      %v459 = vor.u32 1.1754944e-38, %v458
      %v460 = vsel %vm457, %v459, %v455
      %v461 = vmul.f32 1.0, %v460
      %463 = vset.pattern.permute.xlu0 8
      %464 = vperm.xlu0 %463, %v356
      %v465 = vpop.permute.xlu0 %464
      %468 = vset.pattern.permute.xlu0 8
      %469 = vperm.xlu0 %468, %v371
      %v470 = vpop.permute.xlu0 %469
      %473 = vset.pattern.permute.xlu0 8
      %474 = vperm.xlu0 %473, %v386
      %v475 = vpop.permute.xlu0 %474
      %478 = vset.pattern.permute.xlu0 8
      %479 = vperm.xlu0 %478, %v401
      %v480 = vpop.permute.xlu0 %479
      %483 = vset.pattern.permute.xlu0 8
      %484 = vperm.xlu0 %483, %v416
      %v485 = vpop.permute.xlu0 %484
      %488 = vset.pattern.permute.xlu0 8
      %489 = vperm.xlu0 %488, %v431
      %v490 = vpop.permute.xlu0 %489
      %493 = vset.pattern.permute.xlu0 8
      %494 = vperm.xlu0 %493, %v446
      %v495 = vpop.permute.xlu0 %494
      %498 = vset.pattern.permute.xlu0 8
      %499 = vperm.xlu0 %498, %v461
      %v500 = vpop.permute.xlu0 %499
      %v502 = vmul.f32 %v144, %v465
      %v503 = vmul.f32 %v145, %v465
      %v504 = vmul.f32 %v146, %v470
      %v505 = vmul.f32 %v147, %v470
      %v506 = vmul.f32 %v148, %v475
      %v507 = vmul.f32 %v149, %v475
      %v508 = vmul.f32 %v150, %v480
      %v509 = vmul.f32 %v151, %v480
      %v510 = vmul.f32 %v152, %v485
      %v511 = vmul.f32 %v153, %v485
      %v512 = vmul.f32 %v154, %v490
      %v513 = vmul.f32 %v155, %v490
      %v514 = vmul.f32 %v156, %v495
      %v515 = vmul.f32 %v157, %v495
      %v516 = vmul.f32 %v158, %v500
      %v517 = vmul.f32 %v159, %v500
      %518 = vst [vmem:[%s143] sm:$0xff] %v502
      %519 = vst [vmem:[%s143 + $0x8] sm:$0xff] %v503
      %520 = vst [vmem:[%s143 + $0x10] sm:$0xff] %v504
      %521 = vst [vmem:[%s143 + $0x18] sm:$0xff] %v505
      %522 = vst [vmem:[%s143 + $0x20] sm:$0xff] %v506
      %523 = vst [vmem:[%s143 + $0x28] sm:$0xff] %v507
      %524 = vst [vmem:[%s143 + $0x30] sm:$0xff] %v508
      %525 = vst [vmem:[%s143 + $0x38] sm:$0xff] %v509
      %526 = vst [vmem:[%s143 + $0x40] sm:$0xff] %v510
      %527 = vst [vmem:[%s143 + $0x48] sm:$0xff] %v511
      %528 = vst [vmem:[%s143 + $0x50] sm:$0xff] %v512
      %529 = vst [vmem:[%s143 + $0x58] sm:$0xff] %v513
      %530 = vst [vmem:[%s143 + $0x60] sm:$0xff] %v514
      %531 = vst [vmem:[%s143 + $0x68] sm:$0xff] %v515
      %532 = vst [vmem:[%s143 + $0x70] sm:$0xff] %v516
      %533 = vst [vmem:[%s143 + $0x78] sm:$0xff] %v517
      %p534 = scmp.lt.s32.totalorder %s13, 1
      %s535 = scalar_select %p534, %s13, 1
      %s536 = smul.addr %s535, 16
      %s537 = smul.addr %s536, 8
      %s538 = scalar_lea.vmem %s2, %s537
      // Predicated region
      $region29: #{channel_attention.1} parent=27 // pred_check
        %p539 = pneg %p78
      $region30: #{channel_attention.1} parent=27 // pred_check_branch
        %541 = sbr.rel (%p539) target = $region32
      $region31: #{channel_attention.1} parent=27 // pred_region
        _
      $region32: #{channel_attention.1} parent=27 // pred_fallthru
        _
    $region28: #{channel_attention.1} parent=5 // pred_fallthru
      _
    %p542 = scmp.le.s32.totalorder 2, %s8
    // Predicated region
    $region33: #{channel_attention.1} parent=5 // pred_check
      %p543 = pneg %p542
    $region34: #{channel_attention.1} parent=5 // pred_check_branch
      %545 = sbr.rel (%p543) target = $region36
    $region35: #{channel_attention.1} parent=5 // pred_region
      %s546 = ssub.s32 %s8, 2
      // Predicated region
      $region37: #{channel_attention.1} parent=35 // pred_check
        %p547 = pneg %p84
      $region38: #{channel_attention.1} parent=35 // pred_check_branch
        %549 = sbr.rel (%p547) target = $region40
      $region39: #{channel_attention.1} parent=35 // pred_region
        %p550 = scmp.lt.s32.totalorder %s14, 1
        %s551 = scalar_select %p550, %s14, 1
        %s552 = smul.addr %s551, 16
        %s553 = smul.addr %s552, 8
        %s554 = scalar_lea.vmem %s2, %s553
      $region40: #{channel_attention.1} parent=35 // pred_fallthru
        _
    $region36: #{channel_attention.1} parent=5 // pred_fallthru
      _
  $region6: #{channel_attention.1} parent=0 // loop_footer
    %s12 = sadd.s32 1, %s8
  $region7: #{channel_attention.1} parent=0 // loop_footer_branch
    %7 = sbr.rel target = $region3
  $region8: #{channel_attention.1} parent=0 // loop_exit
    _

</llo_original>
